<compile_context>
chip_gen: v5e
topology: v5e:2x2
jax: 0.10.0
libtpu: 0.0.40
codegen_flags: <defaults>
</compile_context>

<pallas_src>
import math

import jax
import jax.numpy as jnp
from jax.experimental import pallas as pl
from jax.experimental.pallas import tpu as pltpu

LN_EPS = 1e-5


def _patch_merging_kernel(h0_ref, h1_ref, w0_ref, w1_ref, b_ref, o_ref):
    """Fused 2x2 gather + LayerNorm(4C) + (4C -> Cout) projection.

    h0_ref: (tr, Wo, 2*C)   dh=0 slab; last dim is [x0 chans | x2 chans].
    h1_ref: (tr, Wo, 2*C)   dh=1 slab; last dim is [x1 chans | x3 chans].
    w0_ref: (2*C, Cout)     gamma-folded weight rows matching the dh=0 slab.
    w1_ref: (2*C, Cout)     gamma-folded weight rows matching the dh=1 slab.
    b_ref : (1, Cout)       beta @ W  (LayerNorm shift folded into a bias).
    o_ref : (tr*Wo, Cout)   flat lane/sublane-dense output slab.
    """
    h0 = h0_ref[...].astype(jnp.float32)   # (tr, Wo, C2)
    h1 = h1_ref[...].astype(jnp.float32)   # (tr, Wo, C2)
    tr, wo, c2 = h0.shape
    m = tr * wo
    inv_n = 1.0 / (2.0 * c2)

    # Two-pass LayerNorm statistics over the full 4*C feature group (matches
    # PyTorch's LayerNorm numerics; data is already resident in VMEM so the
    # second pass is VPU filler hidden under the DMA).
    mean = (jnp.sum(h0, axis=-1, keepdims=True)
            + jnp.sum(h1, axis=-1, keepdims=True)) * inv_n
    d0 = h0 - mean
    d1 = h1 - mean
    var = (jnp.sum(d0 * d0, axis=-1, keepdims=True)
           + jnp.sum(d1 * d1, axis=-1, keepdims=True)) * inv_n
    rstd = jax.lax.rsqrt(var + LN_EPS)

    # Normalize in f32, cast to the matmul dtype BEFORE flattening so any
    # sublane relayout (Wo % 8 != 0) moves half the bytes.
    a0 = (d0 * rstd).astype(w0_ref.dtype).reshape(m, c2)
    a1 = (d1 * rstd).astype(w1_ref.dtype).reshape(m, c2)

    acc = jnp.dot(a0, w0_ref[...], preferred_element_type=jnp.float32)
    acc = acc + jnp.dot(a1, w1_ref[...], preferred_element_type=jnp.float32)
    acc = acc + b_ref[...].astype(jnp.float32)          # (1, Cout) broadcast

    o_ref[...] = acc.astype(o_ref.dtype)


def patch_merging_forward(x, gamma, beta, weight, *, block_m=2048,
                          matmul_dtype=jnp.bfloat16):
    """x: (B, H, W, C).  weight: (4*C, Cout), input-major.  gamma/beta: (4*C,).

    Returns (B, ceil(H/2), ceil(W/2), Cout); matches PatchMerging.forward.
    """
    B, H, W, C = x.shape
    Cout = weight.shape[1]

    # Pad odd spatial dims (matches F.pad in the reference module).
    pad_h, pad_w = H % 2, W % 2
    if pad_h or pad_w:
        x = jnp.pad(x, ((0, 0), (0, pad_h), (0, pad_w), (0, 0)))
        _, H, W, _ = x.shape
    Ho, Wo = H // 2, W // 2
    C2, C4 = 2 * C, 4 * C

    # FREE reshape (row-major layout preserved):
    #   x4[b*Ho+ho, dh, wo, dw*C + c] == x[b, 2*ho+dh, 2*wo+dw, c]
    x4 = x.reshape(B * Ho, 2, Wo, C2)

    # The kernel sees features in the order [x0, x2 | x1, x3] (dh-major, then
    # dw), whereas the PyTorch concat order is [x0, x1, x2, x3].  Permute the
    # parameters to match, then fold the LayerNorm affine into the projection:
    #   (xn * gamma + beta) @ W == xn @ (gamma[:, None] * W) + beta @ W
    idx = jnp.concatenate([
        jnp.arange(0 * C, 1 * C), jnp.arange(2 * C, 3 * C),
        jnp.arange(1 * C, 2 * C), jnp.arange(3 * C, 4 * C)])
    w_p = weight[idx, :]
    g_p = gamma[idx]
    b_p = beta[idx]
    w_fold = g_p[:, None] * w_p                          # (4C, Cout)
    bias = (b_p @ w_p).reshape(1, Cout).astype(jnp.float32)
    w0 = w_fold[:C2].astype(matmul_dtype)                # rows for [x0 | x2]
    w1 = w_fold[C2:].astype(matmul_dtype)                # rows for [x1 | x3]

    n_rows = B * Ho
    n_pix = n_rows * Wo

    # ---- Generation-aware VMEM budget --------------------------------------
    # v5e/v6e: 128 MiB physical -> 96 MiB scoped; v7x: 64 MiB -> 48 MiB.
    try:
        vmem_cap = int(pltpu.get_tpu_info().vmem_capacity_bytes)
    except Exception:
        vmem_cap = 64 * 1024 * 1024
    vmem_limit = max(32 * 1024 * 1024,
                     min(vmem_cap * 3 // 4, 96 * 1024 * 1024))

    # ---- Tile selection -----------------------------------------------------
    # Per-merged-pixel VMEM working set (double-buffered parity streams +
    # output block + in-kernel f32/bf16 temporaries + accumulator).
    x_isz = x.dtype.itemsize
    mm_isz = jnp.dtype(matmul_dtype).itemsize
    per_pixel = (2 * 2 * C2 * x_isz        # two parity input streams, x2 bufs
                 + 2 * Cout * x_isz        # output block, double-buffered
                 + 2 * C2 * 4              # h0/h1 f32 temporaries
                 + 4 * C2 * mm_isz         # a0/a1 + flatten relayout copies
                 + Cout * 4)               # f32 accumulator
    row_cap = max(1, int(vmem_limit * 0.6) // (per_pixel * Wo))

    # tr*Wo must be a multiple of 8 (or the full extent) for a dense out slab.
    tr_align = 8 // math.gcd(Wo, 8)
    tr = max(1, block_m // Wo)             # target merged rows per grid step
    tr = min(tr, row_cap)
    if n_rows >= 2 * tr_align:             # keep >= 2 steps for megacore (v7x)
        tr = min(tr, (n_rows + 1) // 2)
    tr = min(tr, n_rows)
    if tr < n_rows:
        tr = max(tr_align, (tr // tr_align) * tr_align)
        tr = min(tr, n_rows)
    grid = (pl.cdiv(n_rows, tr),)          # partial edge block is masked

    cost = pl.CostEstimate(
        flops=2 * n_pix * C4 * Cout + 10 * n_pix * C4,
        transcendentals=n_pix,
        bytes_accessed=int(n_pix * C4 * x_isz                 # read x once
                           + n_pix * Cout * x_isz             # write out
                           + (w0.size + w1.size) * mm_isz
                           + bias.size * 4),
    )

    out = pl.pallas_call(
        _patch_merging_kernel,
        out_shape=jax.ShapeDtypeStruct((n_pix, Cout), x.dtype),
        grid_spec=pltpu.PrefetchScalarGridSpec(
            num_scalar_prefetch=0,
            grid=grid,
            in_specs=[
                # dh=0 and dh=1 parity slabs of the same x4 array: the squeezed
                # dim-1 index selects the parity; together they read x4 once.
                pl.BlockSpec((tr, None, Wo, C2), lambda i: (i, 0, 0, 0)),
                pl.BlockSpec((tr, None, Wo, C2), lambda i: (i, 1, 0, 0)),
                # Grid-invariant operands (constant index_map): fetched once.
                pl.BlockSpec((C2, Cout), lambda i: (0, 0)),
                pl.BlockSpec((C2, Cout), lambda i: (0, 0)),
                pl.BlockSpec((1, Cout), lambda i: (0, 0)),
            ],
            # Flat, lane/sublane-dense output slab (dense unmasked stores).
            out_specs=pl.BlockSpec((tr * Wo, Cout), lambda i: (i, 0)),
        ),
        compiler_params=pltpu.CompilerParams(
            dimension_semantics=("parallel",),
            vmem_limit_bytes=vmem_limit,
        ),
        cost_estimate=cost,
    )(x4, x4, w0, w1, bias)

    return out.reshape(B, Ho, Wo, Cout)


def make_params(dim, dim_out=None, key=jax.random.PRNGKey(0)):
    """Deterministic parameter init matching PatchMerging.__init__."""
    dim_out = dim_out or 2 * dim
    c4 = 4 * dim
    # LayerNorm(4*dim): default gamma=1, beta=0.
    gamma = jnp.ones((c4,), jnp.float32)
    beta = jnp.zeros((c4,), jnp.float32)
    # nn.Linear(4*dim, dim_out, bias=False), xavier_uniform_ weight
    # (PyTorch shape (dim_out, 4*dim)); stored transposed as (4*dim, dim_out).
    bound = math.sqrt(6.0 / (c4 + dim_out))
    w_pt = jax.random.uniform(key, (dim_out, c4), jnp.float32,
                              minval=-bound, maxval=bound)
    return gamma, beta, w_pt.T


def reference_forward(x, gamma, beta, weight):
    """Pure-JAX (f32) reference for correctness checks."""
    B, H, W, C = x.shape
    pad_h, pad_w = H % 2, W % 2
    if pad_h or pad_w:
        x = jnp.pad(x, ((0, 0), (0, pad_h), (0, pad_w), (0, 0)))
    x0 = x[:, 0::2, 0::2, :]
    x1 = x[:, 1::2, 0::2, :]
    x2 = x[:, 0::2, 1::2, :]
    x3 = x[:, 1::2, 1::2, :]
    xm = jnp.concatenate([x0, x1, x2, x3], axis=-1)
    mean = jnp.mean(xm, axis=-1, keepdims=True)
    var = jnp.mean((xm - mean) ** 2, axis=-1, keepdims=True)
    xn = (xm - mean) / jnp.sqrt(var + LN_EPS)
    y = xn * gamma + beta
    return jnp.einsum("bhwc,cd->bhwd", y, weight)


if __name__ == "__main__":
    def run_case(B, H, W, C, key, block_m=2048):
        k_x, k_w, k_g, k_b = jax.random.split(key, 4)
        x = jax.random.normal(k_x, (B, H, W, C), jnp.float32)
        gamma, beta, weight = make_params(C, key=k_w)
        # Randomize the LayerNorm affine so the gamma/beta folding is exercised
        # (module defaults gamma=1, beta=0 would hide permutation bugs).
        gamma = gamma + 0.1 * jax.random.normal(k_g, gamma.shape, jnp.float32)
        beta = beta + 0.1 * jax.random.normal(k_b, beta.shape, jnp.float32)

        out = patch_merging_forward(x, gamma, beta, weight, block_m=block_m)
        out = jax.block_until_ready(out)

        ref = reference_forward(x, gamma, beta, weight)
        Ho, Wo = (H + H % 2) // 2, (W + W % 2) // 2
        assert out.shape == (B, Ho, Wo, weight.shape[1]), out.shape
        err = float(jnp.max(jnp.abs(out - ref)))
        # bf16 matmul operands (f32 accumulation) -> relaxed tolerance.
        assert err < 5e-2, err

    # Small primary case: B=2, H=W=16, C=4 (two grid steps -> megacore split).
    run_case(2, 16, 16, 4, jax.random.PRNGKey(0))
    # Multi-step grid with a partial (masked) edge block and no row padding.
    run_case(3, 32, 32, 8, jax.random.PRNGKey(1), block_m=320)
    # Odd H/W (wrapper pads) and Wo not a multiple of 8 (sublane-aligned tr).
    run_case(2, 15, 13, 4, jax.random.PRNGKey(2))

    print("KERNEL_OK")
</pallas_src>

<mosaic_0001>
module attributes {stable_mosaic.version = 11 : i64} {
  func.func @_patch_merging_kernel(%arg0: i32, %arg1: memref<8x1x8x8xf32, #tpu.memory_space<vmem>>, %arg2: memref<8x1x8x8xf32, #tpu.memory_space<vmem>>, %arg3: memref<8x8xbf16, #tpu.memory_space<vmem>>, %arg4: memref<8x8xbf16, #tpu.memory_space<vmem>>, %arg5: memref<1x8xf32, #tpu.memory_space<vmem>>, %arg6: memref<64x8xf32, #tpu.memory_space<vmem>>) attributes {dimension_semantics = [#tpu.dimension_semantics<parallel>], iteration_bounds = array<i64: 2>, scalar_prefetch = 0 : i64, scratch_operands = 0 : i64, tpu.core_type = #tpu.core_type<tc>, window_params = [{transform_indices = @transform_0, window_bounds = array<i64: 8, 1, 8, 8>}, {transform_indices = @transform_1, window_bounds = array<i64: 8, 1, 8, 8>}, {pipeline_mode = #tpu.pipeline_mode<synchronous>, transform_indices = @transform_2, window_bounds = array<i64: 8, 8>}, {pipeline_mode = #tpu.pipeline_mode<synchronous>, transform_indices = @transform_3, window_bounds = array<i64: 8, 8>}, {pipeline_mode = #tpu.pipeline_mode<synchronous>, transform_indices = @transform_4, window_bounds = array<i64: 1, 8>}, {transform_indices = @transform_5, window_bounds = array<i64: 64, 8>}]} {
    %c0 = arith.constant 0 : index
    %c0_0 = arith.constant 0 : index
    %c0_1 = arith.constant 0 : index
    %c0_2 = arith.constant 0 : index
    %0 = vector.load %arg1[%c0, %c0_0, %c0_1, %c0_2] : memref<8x1x8x8xf32, #tpu.memory_space<vmem>>, vector<8x1x8x8xf32>
    %1 = vector.shape_cast %0 : vector<8x1x8x8xf32> to vector<8x8x8xf32>
    %c0_3 = arith.constant 0 : index
    %c0_4 = arith.constant 0 : index
    %c0_5 = arith.constant 0 : index
    %c0_6 = arith.constant 0 : index
    %2 = vector.load %arg2[%c0_3, %c0_4, %c0_5, %c0_6] : memref<8x1x8x8xf32, #tpu.memory_space<vmem>>, vector<8x1x8x8xf32>
    %3 = vector.shape_cast %2 : vector<8x1x8x8xf32> to vector<8x8x8xf32>
    %cst = arith.constant dense<0.000000e+00> : vector<8x8xf32>
    %4 = vector.multi_reduction <add>, %1, %cst [2] : vector<8x8x8xf32> to vector<8x8xf32>
    %5 = vector.shape_cast %4 : vector<8x8xf32> to vector<8x8x1xf32>
    %cst_7 = arith.constant dense<0.000000e+00> : vector<8x8xf32>
    %6 = vector.multi_reduction <add>, %3, %cst_7 [2] : vector<8x8x8xf32> to vector<8x8xf32>
    %7 = vector.shape_cast %6 : vector<8x8xf32> to vector<8x8x1xf32>
    %8 = arith.addf %5, %7 : vector<8x8x1xf32>
    %cst_8 = arith.constant 6.250000e-02 : f32
    %9 = vector.broadcast %cst_8 : f32 to vector<8x8x1xf32>
    %10 = arith.mulf %8, %9 : vector<8x8x1xf32>
    %11 = vector.broadcast %10 : vector<8x8x1xf32> to vector<8x8x8xf32>
    %12 = arith.subf %1, %11 : vector<8x8x8xf32>
    %13 = vector.broadcast %10 : vector<8x8x1xf32> to vector<8x8x8xf32>
    %14 = arith.subf %3, %13 : vector<8x8x8xf32>
    %15 = arith.mulf %12, %12 : vector<8x8x8xf32>
    %cst_9 = arith.constant dense<0.000000e+00> : vector<8x8xf32>
    %16 = vector.multi_reduction <add>, %15, %cst_9 [2] : vector<8x8x8xf32> to vector<8x8xf32>
    %17 = vector.shape_cast %16 : vector<8x8xf32> to vector<8x8x1xf32>
    %18 = arith.mulf %14, %14 : vector<8x8x8xf32>
    %cst_10 = arith.constant dense<0.000000e+00> : vector<8x8xf32>
    %19 = vector.multi_reduction <add>, %18, %cst_10 [2] : vector<8x8x8xf32> to vector<8x8xf32>
    %20 = vector.shape_cast %19 : vector<8x8xf32> to vector<8x8x1xf32>
    %21 = arith.addf %17, %20 : vector<8x8x1xf32>
    %cst_11 = arith.constant 6.250000e-02 : f32
    %22 = vector.broadcast %cst_11 : f32 to vector<8x8x1xf32>
    %23 = arith.mulf %21, %22 : vector<8x8x1xf32>
    %cst_12 = arith.constant 9.99999974E-6 : f32
    %24 = vector.broadcast %cst_12 : f32 to vector<8x8x1xf32>
    %25 = arith.addf %23, %24 : vector<8x8x1xf32>
    %26 = math.rsqrt %25 : vector<8x8x1xf32>
    %27 = vector.broadcast %26 : vector<8x8x1xf32> to vector<8x8x8xf32>
    %28 = arith.mulf %12, %27 : vector<8x8x8xf32>
    %29 = arith.truncf %28 : vector<8x8x8xf32> to vector<8x8x8xbf16>
    %30 = vector.shape_cast %29 : vector<8x8x8xbf16> to vector<64x8xbf16>
    %31 = vector.broadcast %26 : vector<8x8x1xf32> to vector<8x8x8xf32>
    %32 = arith.mulf %14, %31 : vector<8x8x8xf32>
    %33 = arith.truncf %32 : vector<8x8x8xf32> to vector<8x8x8xbf16>
    %34 = vector.shape_cast %33 : vector<8x8x8xbf16> to vector<64x8xbf16>
    %c0_13 = arith.constant 0 : index
    %c0_14 = arith.constant 0 : index
    %35 = vector.load %arg3[%c0_13, %c0_14] : memref<8x8xbf16, #tpu.memory_space<vmem>>, vector<8x8xbf16>
    %cst_15 = arith.constant dense<0.000000e+00> : vector<64x8xf32>
    %36 = tpu.matmul %30, %35, %cst_15 {dimension_numbers = #tpu.dot_dimension_numbers<[1], [0], [0], [1], [0, 0, 1, 1], [], []>} : vector<64x8xbf16>, vector<8x8xbf16>, vector<64x8xf32> -> vector<64x8xf32>
    %c0_16 = arith.constant 0 : index
    %c0_17 = arith.constant 0 : index
    %37 = vector.load %arg4[%c0_16, %c0_17] : memref<8x8xbf16, #tpu.memory_space<vmem>>, vector<8x8xbf16>
    %cst_18 = arith.constant dense<0.000000e+00> : vector<64x8xf32>
    %38 = tpu.matmul %34, %37, %cst_18 {dimension_numbers = #tpu.dot_dimension_numbers<[1], [0], [0], [1], [0, 0, 1, 1], [], []>} : vector<64x8xbf16>, vector<8x8xbf16>, vector<64x8xf32> -> vector<64x8xf32>
    %39 = arith.addf %36, %38 : vector<64x8xf32>
    %c0_19 = arith.constant 0 : index
    %c0_20 = arith.constant 0 : index
    %40 = vector.load %arg5[%c0_19, %c0_20] : memref<1x8xf32, #tpu.memory_space<vmem>>, vector<1x8xf32>
    %41 = vector.broadcast %40 : vector<1x8xf32> to vector<64x8xf32>
    %42 = arith.addf %39, %41 : vector<64x8xf32>
    %c0_21 = arith.constant 0 : index
    %c0_22 = arith.constant 0 : index
    %43 = vector.load %arg6[%c0_21, %c0_22] : memref<64x8xf32, #tpu.memory_space<vmem>>, vector<64x8xf32>
    tpu.vector_store %arg6[%c0_21, %c0_22], %42 {strides = array<i32>} : memref<64x8xf32, #tpu.memory_space<vmem>>, vector<64x8xf32>,
    return
  }
  func.func @transform_0(%arg0: i32) -> (i32, i32, i32, i32) {
    %c0_i32 = arith.constant 0 : i32
    %c0_i32_0 = arith.constant 0 : i32
    %c0_i32_1 = arith.constant 0 : i32
    %c0_i32_2 = arith.constant 0 : i32
    return %arg0, %c0_i32, %c0_i32_0, %c0_i32_1 : i32, i32, i32, i32
  }
  func.func @transform_1(%arg0: i32) -> (i32, i32, i32, i32) {
    %c1_i32 = arith.constant 1 : i32
    %c0_i32 = arith.constant 0 : i32
    %c0_i32_0 = arith.constant 0 : i32
    %c0_i32_1 = arith.constant 0 : i32
    return %arg0, %c1_i32, %c0_i32, %c0_i32_0 : i32, i32, i32, i32
  }
  func.func @transform_2(%arg0: i32) -> (i32, i32) {
    %c0_i32 = arith.constant 0 : i32
    %c0_i32_0 = arith.constant 0 : i32
    %c0_i32_1 = arith.constant 0 : i32
    return %c0_i32, %c0_i32_0 : i32, i32
  }
  func.func @transform_3(%arg0: i32) -> (i32, i32) {
    %c0_i32 = arith.constant 0 : i32
    %c0_i32_0 = arith.constant 0 : i32
    %c0_i32_1 = arith.constant 0 : i32
    return %c0_i32, %c0_i32_0 : i32, i32
  }
  func.func @transform_4(%arg0: i32) -> (i32, i32) {
    %c0_i32 = arith.constant 0 : i32
    %c0_i32_0 = arith.constant 0 : i32
    %c0_i32_1 = arith.constant 0 : i32
    return %c0_i32, %c0_i32_0 : i32, i32
  }
  func.func @transform_5(%arg0: i32) -> (i32, i32) {
    %c0_i32 = arith.constant 0 : i32
    %c0_i32_0 = arith.constant 0 : i32
    return %arg0, %c0_i32 : i32, i32
  }
}

</mosaic_0001>

<llo_original>
// kernel: tpu_custom_call.1
$region0: #{tpu_custom_call.1}
  #allocation0 [shape = 'u32[]', space=smem, size = 0x4, offset = 0x4, fixed_abs, tag = 'smem constant byte address 0x4 - core index']
  #allocation1 [shape = 'u32[72,128]{1,0:T(1,128)}', space=vmem, size = 0x9000, scoped, tag = 'internal scratch']
  %s0 = inlined_call_operand.vmem [shape: f32[16,2,8,8], index: 0, kind: input, shape index: {}]
  %s1 = inlined_call_operand.vmem [shape: f32[16,2,8,8], index: 1, kind: input, shape index: {}]
  %s2 = inlined_call_operand.vmem [shape: bf16[8,8], index: 2, kind: input, shape index: {}]
  %s3 = inlined_call_operand.vmem [shape: bf16[8,8], index: 3, kind: input, shape index: {}]
  %s4 = inlined_call_operand.vmem [shape: f32[1,8], index: 4, kind: input, shape index: {}]
  %s5 = inlined_call_operand.vmem [shape: f32[128,8], index: 5, kind: output, shape index: {}]
  %s6 = sld [smem:[#allocation0]]
  $region129: #{tpu_custom_call.1} parent=0
    _
  %s8 = ssub.s32 1, %s6
  %s9 = scalar_select 0, %s8, %s6
  $region1: #{tpu_custom_call.1} parent=0
    #allocation2 [shape = 'u8[65536]{0}', space=vmem, size = 0x10000, scoped, tag = 'input window, operand 0']
    #allocation3 [shape = 'u8[65536]{0}', space=vmem, size = 0x10000, scoped, tag = 'input window, operand 1']
    loop: start=0, step=1, limit=4
    $region2: #{tpu_custom_call.1} parent=1 // loop_pre_header
      _
    $region3: #{tpu_custom_call.1} parent=1 // loop_header
      %s11 = sphi 0, %s15
      %p12 = scmp.ge.s32.totalorder %s11, 4
      %s21 = sphi 0, %s23
      %s24 = sphi 0, %s21
      %s25 = sphi 0, %s24
      %s41 = sphi 0, %s25
      %s47 = sphi 0, %s49
      %s50 = sphi 0, %s47
      %s51 = sphi 0, %s50
      %s67 = sphi 0, %s51
      %s71 = sphi 0, %s71
      %s73 = sphi 0, %s71
      %s74 = sphi 0, %s73
      %s88 = sphi 0, %s74
      %s92 = sphi 0, %s92
      %s94 = sphi 0, %s92
      %s95 = sphi 0, %s94
      %s109 = sphi 0, %s95
      %s113 = sphi 0, %s113
      %s115 = sphi 0, %s113
      %s116 = sphi 0, %s115
      %s130 = sphi 0, %s116
      %s136 = sphi 0, %s138
      %s139 = sphi 0, %s136
      %s140 = sphi 0, %s139
      %s156 = sphi 0, %s140
    $region4: #{tpu_custom_call.1} parent=1 // loop_header_branch
      %14 = sbr.rel (%p12) target = $region8
    $region5: #{tpu_custom_call.1} parent=1 // loop_body
      %s16 = ssub.s32 %s11, 1
      %s17 = ssub.s32 %s11, 2
      %s18 = sadd.s32 %s11, 1
      %s19 = ssub.s32 %s11, %s18
      %p20 = scmp.eq.s32.totalorder %s19, 0
      %s22 = sadd.s32 %s21, 1
      %s23 = scalar_select %p20, %s21, %s22
      %p26 = pneg %p20
      %p27 = scmp.eq.s32.totalorder %s11, 1
      %p28 = por %p26, %p27
      %p29 = scmp.ne.s32.totalorder %s21, %s24
      %p30 = scmp.eq.s32.totalorder %s11, 0
      %p31 = por %p29, %p30
      %p32 = scmp.ne.s32.totalorder %s21, %s24
      %p33 = scmp.eq.s32.totalorder %s16, 1
      %p34 = por %p32, %p33
      %p35 = scmp.ne.s32.totalorder %s24, %s25
      %p36 = scmp.eq.s32.totalorder %s16, 0
      %p37 = por %p35, %p36
      %p38 = scmp.ne.s32.totalorder %s24, %s25
      %p39 = scmp.eq.s32.totalorder %s17, 1
      %p40 = por %p38, %p39
      %p42 = scmp.ne.s32.totalorder %s25, %s41
      %p43 = scmp.eq.s32.totalorder %s17, 0
      %p44 = por %p42, %p43
      %s45 = ssub.s32 %s11, %s18
      %p46 = scmp.eq.s32.totalorder %s45, 0
      %s48 = sadd.s32 %s47, 1
      %s49 = scalar_select %p46, %s47, %s48
      %p52 = pneg %p46
      %p53 = scmp.eq.s32.totalorder %s11, 1
      %p54 = por %p52, %p53
      %p55 = scmp.ne.s32.totalorder %s47, %s50
      %p56 = scmp.eq.s32.totalorder %s11, 0
      %p57 = por %p55, %p56
      %p58 = scmp.ne.s32.totalorder %s47, %s50
      %p59 = scmp.eq.s32.totalorder %s16, 1
      %p60 = por %p58, %p59
      %p61 = scmp.ne.s32.totalorder %s50, %s51
      %p62 = scmp.eq.s32.totalorder %s16, 0
      %p63 = por %p61, %p62
      %p64 = scmp.ne.s32.totalorder %s50, %s51
      %p65 = scmp.eq.s32.totalorder %s17, 1
      %p66 = por %p64, %p65
      %p68 = scmp.ne.s32.totalorder %s51, %s67
      %p69 = scmp.eq.s32.totalorder %s17, 0
      %p70 = por %p68, %p69
      %s72 = sadd.s32 %s71, 1
      %p75 = scmp.eq.s32.totalorder %s11, 1
      %p76 = scmp.ne.s32.totalorder %s71, %s73
      %p77 = scmp.eq.s32.totalorder %s11, 0
      %p78 = por %p76, %p77
      %p79 = scmp.ne.s32.totalorder %s71, %s73
      %p80 = scmp.eq.s32.totalorder %s16, 1
      %p81 = por %p79, %p80
      %p82 = scmp.ne.s32.totalorder %s73, %s74
      %p83 = scmp.eq.s32.totalorder %s16, 0
      %p84 = por %p82, %p83
      %p85 = scmp.ne.s32.totalorder %s73, %s74
      %p86 = scmp.eq.s32.totalorder %s17, 1
      %p87 = por %p85, %p86
      %p89 = scmp.ne.s32.totalorder %s74, %s88
      %p90 = scmp.eq.s32.totalorder %s17, 0
      %p91 = por %p89, %p90
      %s93 = sadd.s32 %s92, 1
      %p96 = scmp.eq.s32.totalorder %s11, 1
      %p97 = scmp.ne.s32.totalorder %s92, %s94
      %p98 = scmp.eq.s32.totalorder %s11, 0
      %p99 = por %p97, %p98
      %p100 = scmp.ne.s32.totalorder %s92, %s94
      %p101 = scmp.eq.s32.totalorder %s16, 1
      %p102 = por %p100, %p101
      %p103 = scmp.ne.s32.totalorder %s94, %s95
      %p104 = scmp.eq.s32.totalorder %s16, 0
      %p105 = por %p103, %p104
      %p106 = scmp.ne.s32.totalorder %s94, %s95
      %p107 = scmp.eq.s32.totalorder %s17, 1
      %p108 = por %p106, %p107
      %p110 = scmp.ne.s32.totalorder %s95, %s109
      %p111 = scmp.eq.s32.totalorder %s17, 0
      %p112 = por %p110, %p111
      %s114 = sadd.s32 %s113, 1
      %p117 = scmp.eq.s32.totalorder %s11, 1
      %p118 = scmp.ne.s32.totalorder %s113, %s115
      %p119 = scmp.eq.s32.totalorder %s11, 0
      %p120 = por %p118, %p119
      %p121 = scmp.ne.s32.totalorder %s113, %s115
      %p122 = scmp.eq.s32.totalorder %s16, 1
      %p123 = por %p121, %p122
      %p124 = scmp.ne.s32.totalorder %s115, %s116
      %p125 = scmp.eq.s32.totalorder %s16, 0
      %p126 = por %p124, %p125
      %p127 = scmp.ne.s32.totalorder %s115, %s116
      %p128 = scmp.eq.s32.totalorder %s17, 1
      %p129 = por %p127, %p128
      %p131 = scmp.ne.s32.totalorder %s116, %s130
      %p132 = scmp.eq.s32.totalorder %s17, 0
      %p133 = por %p131, %p132
      %s134 = ssub.s32 %s11, %s18
      %p135 = scmp.eq.s32.totalorder %s134, 0
      %s137 = sadd.s32 %s136, 1
      %s138 = scalar_select %p135, %s136, %s137
      %p141 = pneg %p135
      %p142 = scmp.eq.s32.totalorder %s11, 1
      %p143 = por %p141, %p142
      %p144 = scmp.ne.s32.totalorder %s136, %s139
      %p145 = scmp.eq.s32.totalorder %s11, 0
      %p146 = por %p144, %p145
      %p147 = scmp.ne.s32.totalorder %s136, %s139
      %p148 = scmp.eq.s32.totalorder %s16, 1
      %p149 = por %p147, %p148
      %p150 = scmp.ne.s32.totalorder %s139, %s140
      %p151 = scmp.eq.s32.totalorder %s16, 0
      %p152 = por %p150, %p151
      %p153 = scmp.ne.s32.totalorder %s139, %s140
      %p154 = scmp.eq.s32.totalorder %s17, 1
      %p155 = por %p153, %p154
      %p157 = scmp.ne.s32.totalorder %s140, %s156
      %p158 = scmp.eq.s32.totalorder %s17, 0
      %p159 = por %p157, %p158
      %p160 = scmp.le.s32.totalorder 1, %s11
      %p161 = scmp.lt.s32.totalorder %s11, 3
      %p162 = pnand %p160, %p161
      %p163 = pneg %p162
      // Predicated region
      $region9: #{tpu_custom_call.1} parent=5 // pred_check
        _
      $region10: #{tpu_custom_call.1} parent=5 // pred_check_branch
        %165 = sbr.rel (%p162) target = $region12
      $region11: #{tpu_custom_call.1} parent=5 // pred_region
        %s166 = ssub.s32 %s11, 1
        // Predicated region
        $region13: #{tpu_custom_call.1} parent=11 // pred_check
          %p167 = pneg %p84
        $region14: #{tpu_custom_call.1} parent=11 // pred_check_branch
          %169 = sbr.rel (%p167) target = $region16
        $region15: #{tpu_custom_call.1} parent=11 // pred_region
          _
        $region16: #{tpu_custom_call.1} parent=11 // pred_fallthru
          _
        // Predicated region
        $region17: #{tpu_custom_call.1} parent=11 // pred_check
          %p170 = pneg %p105
        $region18: #{tpu_custom_call.1} parent=11 // pred_check_branch
          %172 = sbr.rel (%p170) target = $region20
        $region19: #{tpu_custom_call.1} parent=11 // pred_region
          _
        $region20: #{tpu_custom_call.1} parent=11 // pred_fallthru
          _
        // Predicated region
        $region21: #{tpu_custom_call.1} parent=11 // pred_check
          %p173 = pneg %p126
        $region22: #{tpu_custom_call.1} parent=11 // pred_check_branch
          %175 = sbr.rel (%p173) target = $region24
        $region23: #{tpu_custom_call.1} parent=11 // pred_region
          _
        $region24: #{tpu_custom_call.1} parent=11 // pred_fallthru
          _
      $region12: #{tpu_custom_call.1} parent=5 // pred_fallthru
        _
      %p176 = scmp.lt.s32.totalorder %s11, 2
      // Predicated region
      $region25: #{tpu_custom_call.1} parent=5 // pred_check
        %p177 = pneg %p176
      $region26: #{tpu_custom_call.1} parent=5 // pred_check_branch
        %179 = sbr.rel (%p177) target = $region28
      $region27: #{tpu_custom_call.1} parent=5 // pred_region
        // Predicated region
        $region29: #{tpu_custom_call.1} parent=27 // pred_check
          %p180 = pneg %p31
        $region30: #{tpu_custom_call.1} parent=27 // pred_check_branch
          %182 = sbr.rel (%p180) target = $region32
        $region31: #{tpu_custom_call.1} parent=27 // pred_region
          %s183 = sand.u32 %s21, 1
          %s184 = sand.u32 %s21, 1
          %s185 = smul.addr %s184, 64
          %s186 = scalar_lea.vmem [#allocation2], %s185
          %s187 = smul.u32 8, %s11
          %s188 = smul.addr %s187, 2
          %s189 = smul.addr %s188, 8
          %s190 = scalar_lea.vmem %s0, %s189
          // Predicated region
          $region33: #{tpu_custom_call.1} parent=31 // pred_check
            _
          $region34: #{tpu_custom_call.1} parent=31 // pred_check_branch
            %192 = sbr.rel (0) target = $region36
          $region35: #{tpu_custom_call.1} parent=31 // pred_region
            // Predicated region
            $region37: #{tpu_custom_call.1} parent=35 // pred_check
              _
            $region38: #{tpu_custom_call.1} parent=35 // pred_check_branch
              %194 = sbr.rel (0) target = $region40
            $region39: #{tpu_custom_call.1} parent=35 // pred_region
              // Predicated region
              $region52: #{tpu_custom_call.1} parent=39 // pred_check
                _
              $region53: #{tpu_custom_call.1} parent=39 // pred_check_branch
                %224 = sbr.rel (0) target = $region55
              $region54: #{tpu_custom_call.1} parent=39 // pred_region
                loop: start=0, step=1, limit=1
                $region56: #{tpu_custom_call.1} parent=54 // loop_pre_header
                  _
                $region57: #{tpu_custom_call.1} parent=54 // loop_header
                  %s226 = sphi 0, %s230
                  %p227 = scmp.ge.s32.totalorder %s226, 1
                  %s231 = sphi %s190, %s190
                  %s232 = sphi %s186, %s186
                $region58: #{tpu_custom_call.1} parent=54 // loop_header_branch
                  %229 = sbr.rel (%p227) target = $region62
                $region59: #{tpu_custom_call.1} parent=54 // loop_body
                  %v233 = vld [vmem:[%s231] sm:$0xff]
                  %234 = vst [vmem:[%s232] sm:$0xff] %v233
                  %v235 = vld [vmem:[%s231 + $0x10] sm:$0xff]
                  %236 = vst [vmem:[%s232 + $0x8] sm:$0xff] %v235
                  %v237 = vld [vmem:[%s231 + $0x20] sm:$0xff]
                  %238 = vst [vmem:[%s232 + $0x10] sm:$0xff] %v237
                  %v239 = vld [vmem:[%s231 + $0x30] sm:$0xff]
                  %240 = vst [vmem:[%s232 + $0x18] sm:$0xff] %v239
                  %v241 = vld [vmem:[%s231 + $0x40] sm:$0xff]
                  %242 = vst [vmem:[%s232 + $0x20] sm:$0xff] %v241
                  %v243 = vld [vmem:[%s231 + $0x50] sm:$0xff]
                  %244 = vst [vmem:[%s232 + $0x28] sm:$0xff] %v243
                  %v245 = vld [vmem:[%s231 + $0x60] sm:$0xff]
                  %246 = vst [vmem:[%s232 + $0x30] sm:$0xff] %v245
                  %v247 = vld [vmem:[%s231 + $0x70] sm:$0xff]
                  %248 = vst [vmem:[%s232 + $0x38] sm:$0xff] %v247
                $region60: #{tpu_custom_call.1} parent=54 // loop_footer
                  %s230 = sadd.s32 1, %s226
                $region61: #{tpu_custom_call.1} parent=54 // loop_footer_branch
                  %225 = sbr.rel target = $region57
                $region62: #{tpu_custom_call.1} parent=54 // loop_exit
                  _
              $region55: #{tpu_custom_call.1} parent=39 // pred_fallthru
                _
              // Predicated region
              $region63: #{tpu_custom_call.1} parent=39 // pred_check
                _
              $region64: #{tpu_custom_call.1} parent=39 // pred_check_branch
                %250 = sbr.rel target = $region66
              $region65: #{tpu_custom_call.1} parent=39 // pred_region
                _
              $region66: #{tpu_custom_call.1} parent=39 // pred_fallthru
                _
            $region40: #{tpu_custom_call.1} parent=35 // pred_fallthru
              _
            // Predicated region
            $region41: #{tpu_custom_call.1} parent=35 // pred_check
              _
            $region42: #{tpu_custom_call.1} parent=35 // pred_check_branch
              %196 = sbr.rel target = $region44
            $region43: #{tpu_custom_call.1} parent=35 // pred_region
              %s198 = ssub.s32 256, 1
              loop: start=0, step=1, limit=1
              $region45: #{tpu_custom_call.1} parent=43 // loop_pre_header
                _
              $region46: #{tpu_custom_call.1} parent=43 // loop_header
                %s200 = sphi 0, %s204
                %p201 = scmp.ge.s32.totalorder %s200, 1
                %s205 = sphi %s190, %s190
                %s206 = sphi %s186, %s186
              $region47: #{tpu_custom_call.1} parent=43 // loop_header_branch
                %203 = sbr.rel (%p201) target = $region51
              $region48: #{tpu_custom_call.1} parent=43 // loop_body
                %v207 = vld [vmem:[%s205] sm:%s198]
                %208 = vst [vmem:[%s206] sm:%s198] %v207
                %v209 = vld [vmem:[%s205 + $0x10] sm:%s198]
                %210 = vst [vmem:[%s206 + $0x8] sm:%s198] %v209
                %v211 = vld [vmem:[%s205 + $0x20] sm:%s198]
                %212 = vst [vmem:[%s206 + $0x10] sm:%s198] %v211
                %v213 = vld [vmem:[%s205 + $0x30] sm:%s198]
                %214 = vst [vmem:[%s206 + $0x18] sm:%s198] %v213
                %v215 = vld [vmem:[%s205 + $0x40] sm:%s198]
                %216 = vst [vmem:[%s206 + $0x20] sm:%s198] %v215
                %v217 = vld [vmem:[%s205 + $0x50] sm:%s198]
                %218 = vst [vmem:[%s206 + $0x28] sm:%s198] %v217
                %v219 = vld [vmem:[%s205 + $0x60] sm:%s198]
                %220 = vst [vmem:[%s206 + $0x30] sm:%s198] %v219
                %v221 = vld [vmem:[%s205 + $0x70] sm:%s198]
                %222 = vst [vmem:[%s206 + $0x38] sm:%s198] %v221
              $region49: #{tpu_custom_call.1} parent=43 // loop_footer
                %s204 = sadd.s32 1, %s200
              $region50: #{tpu_custom_call.1} parent=43 // loop_footer_branch
                %199 = sbr.rel target = $region46
              $region51: #{tpu_custom_call.1} parent=43 // loop_exit
                _
            $region44: #{tpu_custom_call.1} parent=35 // pred_fallthru
              _
          $region36: #{tpu_custom_call.1} parent=31 // pred_fallthru
            _
          %251 = vnop
        $region32: #{tpu_custom_call.1} parent=27 // pred_fallthru
          _
        // Predicated region
        $region67: #{tpu_custom_call.1} parent=27 // pred_check
          %p252 = pneg %p57
        $region68: #{tpu_custom_call.1} parent=27 // pred_check_branch
          %254 = sbr.rel (%p252) target = $region70
        $region69: #{tpu_custom_call.1} parent=27 // pred_region
          %s255 = sand.u32 %s47, 1
          %s256 = sand.u32 %s47, 1
          %s257 = smul.addr %s256, 64
          %s258 = scalar_lea.vmem [#allocation3], %s257
          %s259 = smul.u32 8, %s11
          %s260 = smul.addr %s259, 2
          %s261 = sadd.s32 1, %s260
          %s262 = smul.addr %s261, 8
          %s263 = scalar_lea.vmem %s1, %s262
          // Predicated region
          $region71: #{tpu_custom_call.1} parent=69 // pred_check
            _
          $region72: #{tpu_custom_call.1} parent=69 // pred_check_branch
            %265 = sbr.rel (0) target = $region74
          $region73: #{tpu_custom_call.1} parent=69 // pred_region
            // Predicated region
            $region75: #{tpu_custom_call.1} parent=73 // pred_check
              _
            $region76: #{tpu_custom_call.1} parent=73 // pred_check_branch
              %267 = sbr.rel (0) target = $region78
            $region77: #{tpu_custom_call.1} parent=73 // pred_region
              // Predicated region
              $region90: #{tpu_custom_call.1} parent=77 // pred_check
                _
              $region91: #{tpu_custom_call.1} parent=77 // pred_check_branch
                %297 = sbr.rel (0) target = $region93
              $region92: #{tpu_custom_call.1} parent=77 // pred_region
                loop: start=0, step=1, limit=1
                $region94: #{tpu_custom_call.1} parent=92 // loop_pre_header
                  _
                $region95: #{tpu_custom_call.1} parent=92 // loop_header
                  %s299 = sphi 0, %s303
                  %p300 = scmp.ge.s32.totalorder %s299, 1
                  %s304 = sphi %s263, %s263
                  %s305 = sphi %s258, %s258
                $region96: #{tpu_custom_call.1} parent=92 // loop_header_branch
                  %302 = sbr.rel (%p300) target = $region100
                $region97: #{tpu_custom_call.1} parent=92 // loop_body
                  %v306 = vld [vmem:[%s304] sm:$0xff]
                  %307 = vst [vmem:[%s305] sm:$0xff] %v306
                  %v308 = vld [vmem:[%s304 + $0x10] sm:$0xff]
                  %309 = vst [vmem:[%s305 + $0x8] sm:$0xff] %v308
                  %v310 = vld [vmem:[%s304 + $0x20] sm:$0xff]
                  %311 = vst [vmem:[%s305 + $0x10] sm:$0xff] %v310
                  %v312 = vld [vmem:[%s304 + $0x30] sm:$0xff]
                  %313 = vst [vmem:[%s305 + $0x18] sm:$0xff] %v312
                  %v314 = vld [vmem:[%s304 + $0x40] sm:$0xff]
                  %315 = vst [vmem:[%s305 + $0x20] sm:$0xff] %v314
                  %v316 = vld [vmem:[%s304 + $0x50] sm:$0xff]
                  %317 = vst [vmem:[%s305 + $0x28] sm:$0xff] %v316
                  %v318 = vld [vmem:[%s304 + $0x60] sm:$0xff]
                  %319 = vst [vmem:[%s305 + $0x30] sm:$0xff] %v318
                  %v320 = vld [vmem:[%s304 + $0x70] sm:$0xff]
                  %321 = vst [vmem:[%s305 + $0x38] sm:$0xff] %v320
                $region98: #{tpu_custom_call.1} parent=92 // loop_footer
                  %s303 = sadd.s32 1, %s299
                $region99: #{tpu_custom_call.1} parent=92 // loop_footer_branch
                  %298 = sbr.rel target = $region95
                $region100: #{tpu_custom_call.1} parent=92 // loop_exit
                  _
              $region93: #{tpu_custom_call.1} parent=77 // pred_fallthru
                _
              // Predicated region
              $region101: #{tpu_custom_call.1} parent=77 // pred_check
                _
              $region102: #{tpu_custom_call.1} parent=77 // pred_check_branch
                %323 = sbr.rel target = $region104
              $region103: #{tpu_custom_call.1} parent=77 // pred_region
                _
              $region104: #{tpu_custom_call.1} parent=77 // pred_fallthru
                _
            $region78: #{tpu_custom_call.1} parent=73 // pred_fallthru
              _
            // Predicated region
            $region79: #{tpu_custom_call.1} parent=73 // pred_check
              _
            $region80: #{tpu_custom_call.1} parent=73 // pred_check_branch
              %269 = sbr.rel target = $region82
            $region81: #{tpu_custom_call.1} parent=73 // pred_region
              %s271 = ssub.s32 256, 1
              loop: start=0, step=1, limit=1
              $region83: #{tpu_custom_call.1} parent=81 // loop_pre_header
                _
              $region84: #{tpu_custom_call.1} parent=81 // loop_header
                %s273 = sphi 0, %s277
                %p274 = scmp.ge.s32.totalorder %s273, 1
                %s278 = sphi %s263, %s263
                %s279 = sphi %s258, %s258
              $region85: #{tpu_custom_call.1} parent=81 // loop_header_branch
                %276 = sbr.rel (%p274) target = $region89
              $region86: #{tpu_custom_call.1} parent=81 // loop_body
                %v280 = vld [vmem:[%s278] sm:%s271]
                %281 = vst [vmem:[%s279] sm:%s271] %v280
                %v282 = vld [vmem:[%s278 + $0x10] sm:%s271]
                %283 = vst [vmem:[%s279 + $0x8] sm:%s271] %v282
                %v284 = vld [vmem:[%s278 + $0x20] sm:%s271]
                %285 = vst [vmem:[%s279 + $0x10] sm:%s271] %v284
                %v286 = vld [vmem:[%s278 + $0x30] sm:%s271]
                %287 = vst [vmem:[%s279 + $0x18] sm:%s271] %v286
                %v288 = vld [vmem:[%s278 + $0x40] sm:%s271]
                %289 = vst [vmem:[%s279 + $0x20] sm:%s271] %v288
                %v290 = vld [vmem:[%s278 + $0x50] sm:%s271]
                %291 = vst [vmem:[%s279 + $0x28] sm:%s271] %v290
                %v292 = vld [vmem:[%s278 + $0x60] sm:%s271]
                %293 = vst [vmem:[%s279 + $0x30] sm:%s271] %v292
                %v294 = vld [vmem:[%s278 + $0x70] sm:%s271]
                %295 = vst [vmem:[%s279 + $0x38] sm:%s271] %v294
              $region87: #{tpu_custom_call.1} parent=81 // loop_footer
                %s277 = sadd.s32 1, %s273
              $region88: #{tpu_custom_call.1} parent=81 // loop_footer_branch
                %272 = sbr.rel target = $region84
              $region89: #{tpu_custom_call.1} parent=81 // loop_exit
                _
            $region82: #{tpu_custom_call.1} parent=73 // pred_fallthru
              _
          $region74: #{tpu_custom_call.1} parent=69 // pred_fallthru
            _
          %324 = vnop
        $region70: #{tpu_custom_call.1} parent=27 // pred_fallthru
          _
      $region28: #{tpu_custom_call.1} parent=5 // pred_fallthru
        _
      %p325 = scmp.le.s32.totalorder 1, %s11
      %p326 = scmp.lt.s32.totalorder %s11, 3
      %p327 = pnand %p325, %p326
      %p328 = pneg %p327
      // Predicated region
      $region105: #{tpu_custom_call.1} parent=5 // pred_check
        _
      $region106: #{tpu_custom_call.1} parent=5 // pred_check_branch
        %330 = sbr.rel (%p327) target = $region108
      $region107: #{tpu_custom_call.1} parent=5 // pred_region
        %s331 = ssub.s32 %s11, 1
        %s332 = sand.u32 %s24, 1
        %s333 = sand.u32 %s24, 1
        %s334 = smul.addr %s333, 64
        %s335 = scalar_lea.vmem [#allocation2], %s334
        // Predicated region
        $region109: #{tpu_custom_call.1} parent=107 // pred_check
          %p336 = pneg %p37
        $region110: #{tpu_custom_call.1} parent=107 // pred_check_branch
          %338 = sbr.rel (%p336) target = $region112
        $region111: #{tpu_custom_call.1} parent=107 // pred_region
          _
        $region112: #{tpu_custom_call.1} parent=107 // pred_fallthru
          _
        %s339 = sand.u32 %s50, 1
        %s340 = sand.u32 %s50, 1
        %s341 = smul.addr %s340, 64
        %s342 = scalar_lea.vmem [#allocation3], %s341
        // Predicated region
        $region113: #{tpu_custom_call.1} parent=107 // pred_check
          %p343 = pneg %p63
        $region114: #{tpu_custom_call.1} parent=107 // pred_check_branch
          %345 = sbr.rel (%p343) target = $region116
        $region115: #{tpu_custom_call.1} parent=107 // pred_region
          _
        $region116: #{tpu_custom_call.1} parent=107 // pred_fallthru
          _
        %s346 = sand.u32 %s24, 1
        %s347 = sand.u32 %s24, 1
        %s348 = smul.addr %s347, 64
        %s349 = scalar_lea.vmem [#allocation2], %s348
        %p350 = pneg %p37
        %p351 = pneg %p34
        %s352 = sand.u32 %s50, 1
        %s353 = sand.u32 %s50, 1
        %s354 = smul.addr %s353, 64
        %s355 = scalar_lea.vmem [#allocation3], %s354
        %p356 = pneg %p63
        %p357 = pneg %p60
        %p358 = pneg %p84
        %p359 = pneg %p81
        %p360 = pneg %p105
        %p361 = pneg %p102
        %p362 = pneg %p126
        %p363 = pneg %p123
        %p364 = pneg %p152
        %p365 = pneg %p149
        %s366 = smul.u32 8, %s16
        %p367 = scmp.lt.s32.totalorder %s366, 15
        %s368 = scalar_select %p367, %s366, 15
        %s369 = smul.addr %s368, 8
        %s370 = scalar_lea.vmem %s5, %s369
        %s371 = smul.u32 8, %s16
        %s372 = smul.u32 8, %s16
        %s373 = smul.u32 8, %s16
        %p374 = scmp.lt.s32.totalorder %s373, 15
        %s375 = scalar_select %p374, %s373, 15
        %s376 = smul.addr %s375, 8
        %s377 = scalar_lea.vmem %s5, %s376
        %s378 = smul.u32 8, %s16
        %v380 = vld [vmem:[%s335] sm:$0xff]
        %v381 = vld [vmem:[%s335 + $0x8] sm:$0xff]
        %v382 = vld [vmem:[%s335 + $0x10] sm:$0xff]
        %v383 = vld [vmem:[%s335 + $0x18] sm:$0xff]
        %v384 = vld [vmem:[%s335 + $0x20] sm:$0xff]
        %v385 = vld [vmem:[%s335 + $0x28] sm:$0xff]
        %v386 = vld [vmem:[%s335 + $0x30] sm:$0xff]
        %v387 = vld [vmem:[%s335 + $0x38] sm:$0xff]
        %v388 = vld [vmem:[%s342] sm:$0xff]
        %v389 = vld [vmem:[%s342 + $0x8] sm:$0xff]
        %v390 = vld [vmem:[%s342 + $0x10] sm:$0xff]
        %v391 = vld [vmem:[%s342 + $0x18] sm:$0xff]
        %v392 = vld [vmem:[%s342 + $0x20] sm:$0xff]
        %v393 = vld [vmem:[%s342 + $0x28] sm:$0xff]
        %v394 = vld [vmem:[%s342 + $0x30] sm:$0xff]
        %v395 = vld [vmem:[%s342 + $0x38] sm:$0xff]
        %vm396 = vcmask 64512
        %v397 = vsel %vm396, %v380, 0.0
        %398 = vadd.xlane.f32.xlu0 %v397
        %v399 = vpop.xlane.xlu0 %398
        %v400 = vsel %vm396, %v381, 0.0
        %401 = vadd.xlane.f32.xlu0 %v400
        %v402 = vpop.xlane.xlu0 %401
        %v403 = vsel %vm396, %v382, 0.0
        %404 = vadd.xlane.f32.xlu0 %v403
        %v405 = vpop.xlane.xlu0 %404
        %v406 = vsel %vm396, %v383, 0.0
        %407 = vadd.xlane.f32.xlu0 %v406
        %v408 = vpop.xlane.xlu0 %407
        %v409 = vsel %vm396, %v384, 0.0
        %410 = vadd.xlane.f32.xlu0 %v409
        %v411 = vpop.xlane.xlu0 %410
        %v412 = vsel %vm396, %v385, 0.0
        %413 = vadd.xlane.f32.xlu0 %v412
        %v414 = vpop.xlane.xlu0 %413
        %v415 = vsel %vm396, %v386, 0.0
        %416 = vadd.xlane.f32.xlu0 %v415
        %v417 = vpop.xlane.xlu0 %416
        %v418 = vsel %vm396, %v387, 0.0
        %419 = vadd.xlane.f32.xlu0 %v418
        %v420 = vpop.xlane.xlu0 %419
        %v421 = vsel %vm396, %v388, 0.0
        %422 = vadd.xlane.f32.xlu0 %v421
        %v423 = vpop.xlane.xlu0 %422
        %v424 = vsel %vm396, %v389, 0.0
        %425 = vadd.xlane.f32.xlu0 %v424
        %v426 = vpop.xlane.xlu0 %425
        %v427 = vsel %vm396, %v390, 0.0
        %428 = vadd.xlane.f32.xlu0 %v427
        %v429 = vpop.xlane.xlu0 %428
        %v430 = vsel %vm396, %v391, 0.0
        %431 = vadd.xlane.f32.xlu0 %v430
        %v432 = vpop.xlane.xlu0 %431
        %v433 = vsel %vm396, %v392, 0.0
        %434 = vadd.xlane.f32.xlu0 %v433
        %v435 = vpop.xlane.xlu0 %434
        %v436 = vsel %vm396, %v393, 0.0
        %437 = vadd.xlane.f32.xlu0 %v436
        %v438 = vpop.xlane.xlu0 %437
        %v439 = vsel %vm396, %v394, 0.0
        %440 = vadd.xlane.f32.xlu0 %v439
        %v441 = vpop.xlane.xlu0 %440
        %v442 = vsel %vm396, %v395, 0.0
        %443 = vadd.xlane.f32.xlu0 %v442
        %v444 = vpop.xlane.xlu0 %443
        %v445 = vadd.f32 %v399, %v423
        %v446 = vadd.f32 %v402, %v426
        %v447 = vadd.f32 %v405, %v429
        %v448 = vadd.f32 %v408, %v432
        %v449 = vadd.f32 %v411, %v435
        %v450 = vadd.f32 %v414, %v438
        %v451 = vadd.f32 %v417, %v441
        %v452 = vadd.f32 %v420, %v444
        %v453 = vmul.f32 %v445, 0.0625
        %v454 = vmul.f32 %v446, 0.0625
        %v455 = vmul.f32 %v447, 0.0625
        %v456 = vmul.f32 %v448, 0.0625
        %v457 = vmul.f32 %v449, 0.0625
        %v458 = vmul.f32 %v450, 0.0625
        %v459 = vmul.f32 %v451, 0.0625
        %v460 = vmul.f32 %v452, 0.0625
        %v461 = vsub.f32 %v380, %v453
        %v462 = vsub.f32 %v381, %v454
        %v463 = vsub.f32 %v382, %v455
        %v464 = vsub.f32 %v383, %v456
        %v465 = vsub.f32 %v384, %v457
        %v466 = vsub.f32 %v385, %v458
        %v467 = vsub.f32 %v386, %v459
        %v468 = vsub.f32 %v387, %v460
        %v469 = vsub.f32 %v388, %v453
        %v470 = vsub.f32 %v389, %v454
        %v471 = vsub.f32 %v390, %v455
        %v472 = vsub.f32 %v391, %v456
        %v473 = vsub.f32 %v392, %v457
        %v474 = vsub.f32 %v393, %v458
        %v475 = vsub.f32 %v394, %v459
        %v476 = vsub.f32 %v395, %v460
        %v477 = vmul.f32 %v461, %v461
        %v478 = vmul.f32 %v462, %v462
        %v479 = vmul.f32 %v463, %v463
        %v480 = vmul.f32 %v464, %v464
        %v481 = vmul.f32 %v465, %v465
        %v482 = vmul.f32 %v466, %v466
        %v483 = vmul.f32 %v467, %v467
        %v484 = vmul.f32 %v468, %v468
        %v485 = vsel %vm396, %v477, 0.0
        %486 = vadd.xlane.f32.xlu0 %v485
        %v487 = vpop.xlane.xlu0 %486
        %v488 = vsel %vm396, %v478, 0.0
        %489 = vadd.xlane.f32.xlu0 %v488
        %v490 = vpop.xlane.xlu0 %489
        %v491 = vsel %vm396, %v479, 0.0
        %492 = vadd.xlane.f32.xlu0 %v491
        %v493 = vpop.xlane.xlu0 %492
        %v494 = vsel %vm396, %v480, 0.0
        %495 = vadd.xlane.f32.xlu0 %v494
        %v496 = vpop.xlane.xlu0 %495
        %v497 = vsel %vm396, %v481, 0.0
        %498 = vadd.xlane.f32.xlu0 %v497
        %v499 = vpop.xlane.xlu0 %498
        %v500 = vsel %vm396, %v482, 0.0
        %501 = vadd.xlane.f32.xlu0 %v500
        %v502 = vpop.xlane.xlu0 %501
        %v503 = vsel %vm396, %v483, 0.0
        %504 = vadd.xlane.f32.xlu0 %v503
        %v505 = vpop.xlane.xlu0 %504
        %v506 = vsel %vm396, %v484, 0.0
        %507 = vadd.xlane.f32.xlu0 %v506
        %v508 = vpop.xlane.xlu0 %507
        %v509 = vmul.f32 %v469, %v469
        %v510 = vmul.f32 %v470, %v470
        %v511 = vmul.f32 %v471, %v471
        %v512 = vmul.f32 %v472, %v472
        %v513 = vmul.f32 %v473, %v473
        %v514 = vmul.f32 %v474, %v474
        %v515 = vmul.f32 %v475, %v475
        %v516 = vmul.f32 %v476, %v476
        %v517 = vsel %vm396, %v509, 0.0
        %518 = vadd.xlane.f32.xlu0 %v517
        %v519 = vpop.xlane.xlu0 %518
        %v520 = vsel %vm396, %v510, 0.0
        %521 = vadd.xlane.f32.xlu0 %v520
        %v522 = vpop.xlane.xlu0 %521
        %v523 = vsel %vm396, %v511, 0.0
        %524 = vadd.xlane.f32.xlu0 %v523
        %v525 = vpop.xlane.xlu0 %524
        %v526 = vsel %vm396, %v512, 0.0
        %527 = vadd.xlane.f32.xlu0 %v526
        %v528 = vpop.xlane.xlu0 %527
        %v529 = vsel %vm396, %v513, 0.0
        %530 = vadd.xlane.f32.xlu0 %v529
        %v531 = vpop.xlane.xlu0 %530
        %v532 = vsel %vm396, %v514, 0.0
        %533 = vadd.xlane.f32.xlu0 %v532
        %v534 = vpop.xlane.xlu0 %533
        %v535 = vsel %vm396, %v515, 0.0
        %536 = vadd.xlane.f32.xlu0 %v535
        %v537 = vpop.xlane.xlu0 %536
        %v538 = vsel %vm396, %v516, 0.0
        %539 = vadd.xlane.f32.xlu0 %v538
        %v540 = vpop.xlane.xlu0 %539
        %v541 = vadd.f32 %v487, %v519
        %v542 = vadd.f32 %v490, %v522
        %v543 = vadd.f32 %v493, %v525
        %v544 = vadd.f32 %v496, %v528
        %v545 = vadd.f32 %v499, %v531
        %v546 = vadd.f32 %v502, %v534
        %v547 = vadd.f32 %v505, %v537
        %v548 = vadd.f32 %v508, %v540
        %v549 = vmul.f32 %v541, 0.0625
        %v550 = vmul.f32 %v542, 0.0625
        %v551 = vmul.f32 %v543, 0.0625
        %v552 = vmul.f32 %v544, 0.0625
        %v553 = vmul.f32 %v545, 0.0625
        %v554 = vmul.f32 %v546, 0.0625
        %v555 = vmul.f32 %v547, 0.0625
        %v556 = vmul.f32 %v548, 0.0625
        %v557 = vadd.f32 %v549, 1e-05
        %v558 = vadd.f32 %v550, 1e-05
        %v559 = vadd.f32 %v551, 1e-05
        %v560 = vadd.f32 %v552, 1e-05
        %v561 = vadd.f32 %v553, 1e-05
        %v562 = vadd.f32 %v554, 1e-05
        %v563 = vadd.f32 %v555, 1e-05
        %v564 = vadd.f32 %v556, 1e-05
        %v565 = vrsqrt.pop %v557
        %v566 = vmul.f32 %v565, %v557
        %v567 = vmul.f32 %v566, %v565
        %v568 = vmul.f32 0.5, %v567
        %v569 = vsub.f32 1.5, %v568
        %v570 = vmul.f32 %v565, %v569
        %vm571 = vweird.f32 %v557
        %vm572 = vweird.f32 %v565
        %vm573 = vmor %vm571, %vm572
        %v574 = vsel %vm573, %v565, %v570
        %v575 = vrsqrt.pop %v558
        %v576 = vmul.f32 %v575, %v558
        %v577 = vmul.f32 %v576, %v575
        %v578 = vmul.f32 0.5, %v577
        %v579 = vsub.f32 1.5, %v578
        %v580 = vmul.f32 %v575, %v579
        %vm581 = vweird.f32 %v558
        %vm582 = vweird.f32 %v575
        %vm583 = vmor %vm581, %vm582
        %v584 = vsel %vm583, %v575, %v580
        %v585 = vrsqrt.pop %v559
        %v586 = vmul.f32 %v585, %v559
        %v587 = vmul.f32 %v586, %v585
        %v588 = vmul.f32 0.5, %v587
        %v589 = vsub.f32 1.5, %v588
        %v590 = vmul.f32 %v585, %v589
        %vm591 = vweird.f32 %v559
        %vm592 = vweird.f32 %v585
        %vm593 = vmor %vm591, %vm592
        %v594 = vsel %vm593, %v585, %v590
        %v595 = vrsqrt.pop %v560
        %v596 = vmul.f32 %v595, %v560
        %v597 = vmul.f32 %v596, %v595
        %v598 = vmul.f32 0.5, %v597
        %v599 = vsub.f32 1.5, %v598
        %v600 = vmul.f32 %v595, %v599
        %vm601 = vweird.f32 %v560
        %vm602 = vweird.f32 %v595
        %vm603 = vmor %vm601, %vm602
        %v604 = vsel %vm603, %v595, %v600
        %v605 = vrsqrt.pop %v561
        %v606 = vmul.f32 %v605, %v561
        %v607 = vmul.f32 %v606, %v605
        %v608 = vmul.f32 0.5, %v607
        %v609 = vsub.f32 1.5, %v608
        %v610 = vmul.f32 %v605, %v609
        %vm611 = vweird.f32 %v561
        %vm612 = vweird.f32 %v605
        %vm613 = vmor %vm611, %vm612
        %v614 = vsel %vm613, %v605, %v610
        %v615 = vrsqrt.pop %v562
        %v616 = vmul.f32 %v615, %v562
        %v617 = vmul.f32 %v616, %v615
        %v618 = vmul.f32 0.5, %v617
        %v619 = vsub.f32 1.5, %v618
        %v620 = vmul.f32 %v615, %v619
        %vm621 = vweird.f32 %v562
        %vm622 = vweird.f32 %v615
        %vm623 = vmor %vm621, %vm622
        %v624 = vsel %vm623, %v615, %v620
        %v625 = vrsqrt.pop %v563
        %v626 = vmul.f32 %v625, %v563
        %v627 = vmul.f32 %v626, %v625
        %v628 = vmul.f32 0.5, %v627
        %v629 = vsub.f32 1.5, %v628
        %v630 = vmul.f32 %v625, %v629
        %vm631 = vweird.f32 %v563
        %vm632 = vweird.f32 %v625
        %vm633 = vmor %vm631, %vm632
        %v634 = vsel %vm633, %v625, %v630
        %v635 = vrsqrt.pop %v564
        %v636 = vmul.f32 %v635, %v564
        %v637 = vmul.f32 %v636, %v635
        %v638 = vmul.f32 0.5, %v637
        %v639 = vsub.f32 1.5, %v638
        %v640 = vmul.f32 %v635, %v639
        %vm641 = vweird.f32 %v564
        %vm642 = vweird.f32 %v635
        %vm643 = vmor %vm641, %vm642
        %v644 = vsel %vm643, %v635, %v640
        %v645 = vmul.f32 %v461, %v574
        %v646 = vmul.f32 %v462, %v584
        %v647 = vmul.f32 %v463, %v594
        %v648 = vmul.f32 %v464, %v604
        %v649 = vmul.f32 %v465, %v614
        %v650 = vmul.f32 %v466, %v624
        %v651 = vmul.f32 %v467, %v634
        %v652 = vmul.f32 %v468, %v644
        %v653 = vpack.c.bf16 %v645, %v645
        %v654 = vpack.c.bf16 %v646, %v646
        %v655 = vpack.c.bf16 %v647, %v647
        %v656 = vpack.c.bf16 %v648, %v648
        %v657 = vpack.c.bf16 %v649, %v649
        %v658 = vpack.c.bf16 %v650, %v650
        %v659 = vpack.c.bf16 %v651, %v651
        %v660 = vpack.c.bf16 %v652, %v652
        %v661 = vmul.f32 %v469, %v574
        %v662 = vmul.f32 %v470, %v584
        %v663 = vmul.f32 %v471, %v594
        %v664 = vmul.f32 %v472, %v604
        %v665 = vmul.f32 %v473, %v614
        %v666 = vmul.f32 %v474, %v624
        %v667 = vmul.f32 %v475, %v634
        %v668 = vmul.f32 %v476, %v644
        %v669 = vpack.c.bf16 %v661, %v661
        %v670 = vpack.c.bf16 %v662, %v662
        %v671 = vpack.c.bf16 %v663, %v663
        %v672 = vpack.c.bf16 %v664, %v664
        %v673 = vpack.c.bf16 %v665, %v665
        %v674 = vpack.c.bf16 %v666, %v666
        %v675 = vpack.c.bf16 %v667, %v667
        %v676 = vpack.c.bf16 %v668, %v668
        %v677 = vld [vmem:[%s2] sm:$0xf]
        %v678 = vld [vmem:[%s3] sm:$0xf]
        %v687 = vunpack.c.l.b16 %v669
        %v688 = vunpack.c.l.b16 %v670
        %v689 = vunpack.c.l.b16 %v671
        %v690 = vunpack.c.l.b16 %v672
        %v691 = vunpack.c.l.b16 %v673
        %v692 = vunpack.c.l.b16 %v674
        %v693 = vunpack.c.l.b16 %v675
        %v694 = vunpack.c.l.b16 %v676
        %v695 = vpack.c.b16 %v688, %v687
        %v696 = vpack.c.b16 %v690, %v689
        %v697 = vpack.c.b16 %v692, %v691
        %v698 = vpack.c.b16 %v694, %v693
        %v700 = vsel %vm396, %v695, 0
        %v703 = vsel %vm396, %v696, 0
        %v706 = vsel %vm396, %v697, 0
        %v709 = vsel %vm396, %v698, 0
        %vm711 = vcmask 1043456
        %v713 = vsel %vm711, %v678, 0
        %715 = vmatpush.bf16.msra.mxu0 0
        %716 = vmatpush.bf16.msra.mxu0 0
        %717 = vmatpush.bf16.msra.mxu0 0
        %718 = vmatpush.bf16.msra.mxu0 0
        %719 = vmatpush.bf16.msra.mxu0 0
        %720 = vmatpush.bf16.msra.mxu0 0
        %721 = vmatpush.bf16.msra.mxu0 0
        %722 = vmatpush.bf16.msra.mxu0 %v713
        %723 = vmatmul.bf16.gmra.mxu0 %v700
        %v724 = vpop.f32.mrf.mxu0
        %v725 = vadd.f32 0.0, %v724
        %v726 = vpop.f32.mrf.mxu0
        %v727 = vadd.f32 0.0, %v726
        %728 = vmatmul.bf16.gmra.mxu0 %v703
        %v729 = vpop.f32.mrf.mxu0
        %v730 = vadd.f32 0.0, %v729
        %v731 = vpop.f32.mrf.mxu0
        %v732 = vadd.f32 0.0, %v731
        %733 = vmatmul.bf16.gmra.mxu0 %v706
        %v734 = vpop.f32.mrf.mxu0
        %v735 = vadd.f32 0.0, %v734
        %v736 = vpop.f32.mrf.mxu0
        %v737 = vadd.f32 0.0, %v736
        %738 = vmatmul.bf16.gmra.mxu0 %v709
        %v739 = vpop.f32.mrf.mxu0
        %v740 = vadd.f32 0.0, %v739
        %v741 = vpop.f32.mrf.mxu0
        %v742 = vadd.f32 0.0, %v741
        %743 = vdwg.mxu0
        %v752 = vunpack.c.l.b16 %v653
        %v753 = vunpack.c.l.b16 %v654
        %v754 = vunpack.c.l.b16 %v655
        %v755 = vunpack.c.l.b16 %v656
        %v756 = vunpack.c.l.b16 %v657
        %v757 = vunpack.c.l.b16 %v658
        %v758 = vunpack.c.l.b16 %v659
        %v759 = vunpack.c.l.b16 %v660
        %v760 = vpack.c.b16 %v753, %v752
        %v761 = vpack.c.b16 %v755, %v754
        %v762 = vpack.c.b16 %v757, %v756
        %v763 = vpack.c.b16 %v759, %v758
        %v765 = vsel %vm396, %v760, 0
        %v768 = vsel %vm396, %v761, 0
        %v771 = vsel %vm396, %v762, 0
        %v774 = vsel %vm396, %v763, 0
        %v777 = vsel %vm711, %v677, 0
        %779 = vmatpush.bf16.msra.mxu0 0
        %780 = vmatpush.bf16.msra.mxu0 0
        %781 = vmatpush.bf16.msra.mxu0 0
        %782 = vmatpush.bf16.msra.mxu0 0
        %783 = vmatpush.bf16.msra.mxu0 0
        %784 = vmatpush.bf16.msra.mxu0 0
        %785 = vmatpush.bf16.msra.mxu0 0
        %786 = vmatpush.bf16.msra.mxu0 %v777
        %787 = vmatmul.bf16.gmra.mxu0 %v765
        %v788 = vpop.f32.mrf.mxu0
        %v789 = vadd.f32 %v725, %v788
        %v790 = vpop.f32.mrf.mxu0
        %v791 = vadd.f32 %v727, %v790
        %792 = vmatmul.bf16.gmra.mxu0 %v768
        %v793 = vpop.f32.mrf.mxu0
        %v794 = vadd.f32 %v730, %v793
        %v795 = vpop.f32.mrf.mxu0
        %v796 = vadd.f32 %v732, %v795
        %797 = vmatmul.bf16.gmra.mxu0 %v771
        %v798 = vpop.f32.mrf.mxu0
        %v799 = vadd.f32 %v735, %v798
        %v800 = vpop.f32.mrf.mxu0
        %v801 = vadd.f32 %v737, %v800
        %802 = vmatmul.bf16.gmra.mxu0 %v774
        %v803 = vpop.f32.mrf.mxu0
        %v804 = vadd.f32 %v740, %v803
        %v805 = vpop.f32.mrf.mxu0
        %v806 = vadd.f32 %v742, %v805
        %807 = vdwg.mxu0
        %v808 = vld [vmem:[%s4] sm:$0x1]
        %v810 = vperm.slane %v808, 0
        %v812 = vadd.f32 %v789, %v810
        %v813 = vadd.f32 %v791, %v810
        %v814 = vadd.f32 %v794, %v810
        %v815 = vadd.f32 %v796, %v810
        %v816 = vadd.f32 %v799, %v810
        %v817 = vadd.f32 %v801, %v810
        %v818 = vadd.f32 %v804, %v810
        %v819 = vadd.f32 %v806, %v810
        %820 = vst.msk [vmem:[%s377] sm:$0xff] %vm396, %v812
        %821 = vst.msk [vmem:[%s377 + $0x8] sm:$0xff] %vm396, %v813
        %822 = vst.msk [vmem:[%s377 + $0x10] sm:$0xff] %vm396, %v814
        %823 = vst.msk [vmem:[%s377 + $0x18] sm:$0xff] %vm396, %v815
        %824 = vst.msk [vmem:[%s377 + $0x20] sm:$0xff] %vm396, %v816
        %825 = vst.msk [vmem:[%s377 + $0x28] sm:$0xff] %vm396, %v817
        %826 = vst.msk [vmem:[%s377 + $0x30] sm:$0xff] %vm396, %v818
        %827 = vst.msk [vmem:[%s377 + $0x38] sm:$0xff] %vm396, %v819
        %s828 = smul.u32 8, %s16
        %p829 = scmp.lt.s32.totalorder %s828, 15
        %s830 = scalar_select %p829, %s828, 15
        %s831 = smul.addr %s830, 8
        %s832 = scalar_lea.vmem %s5, %s831
        // Predicated region
        $region117: #{tpu_custom_call.1} parent=107 // pred_check
          %p833 = pneg %p149
        $region118: #{tpu_custom_call.1} parent=107 // pred_check_branch
          %835 = sbr.rel (%p833) target = $region120
        $region119: #{tpu_custom_call.1} parent=107 // pred_region
          %s836 = smul.u32 8, %s16
        $region120: #{tpu_custom_call.1} parent=107 // pred_fallthru
          _
      $region108: #{tpu_custom_call.1} parent=5 // pred_fallthru
        _
      %p837 = scmp.le.s32.totalorder 2, %s11
      // Predicated region
      $region121: #{tpu_custom_call.1} parent=5 // pred_check
        %p838 = pneg %p837
      $region122: #{tpu_custom_call.1} parent=5 // pred_check_branch
        %840 = sbr.rel (%p838) target = $region124
      $region123: #{tpu_custom_call.1} parent=5 // pred_region
        %s841 = ssub.s32 %s11, 2
        // Predicated region
        $region125: #{tpu_custom_call.1} parent=123 // pred_check
          %p842 = pneg %p155
        $region126: #{tpu_custom_call.1} parent=123 // pred_check_branch
          %844 = sbr.rel (%p842) target = $region128
        $region127: #{tpu_custom_call.1} parent=123 // pred_region
          %s845 = smul.u32 8, %s17
          %p846 = scmp.lt.s32.totalorder %s845, 15
          %s847 = scalar_select %p846, %s845, 15
          %s848 = smul.addr %s847, 8
          %s849 = scalar_lea.vmem %s5, %s848
        $region128: #{tpu_custom_call.1} parent=123 // pred_fallthru
          _
      $region124: #{tpu_custom_call.1} parent=5 // pred_fallthru
        _
    $region6: #{tpu_custom_call.1} parent=1 // loop_footer
      %s15 = sadd.s32 1, %s11
    $region7: #{tpu_custom_call.1} parent=1 // loop_footer_branch
      %10 = sbr.rel target = $region3
    $region8: #{tpu_custom_call.1} parent=1 // loop_exit
      _

</llo_original>
